<compile_context>
chip_gen: v7x
topology: tpu7x:2x2x1
jax: 0.10.0
libtpu: 0.0.40
codegen_flags: <defaults>
</compile_context>

<pallas_src>
import functools

import numpy as np
import jax
import jax.numpy as jnp
from jax import lax
from jax.experimental import pallas as pl
from jax.experimental.pallas import tpu as pltpu


def edge_refine_kernel(x_ref, w_ref, b_ref, o_ref, *, H, W, log2w):
    # x_ref : (R, Np)  VMEM  R = G*C rows (G images x C channels), pixels on lanes
    # w_ref : (R, R)   VMEM  block-diagonal BN-folded 1x1 conv weight = kron(I_G, w)
    # b_ref : (R, 1)   VMEM  BN-folded bias column (tiled per packed image)
    # o_ref : (R, Np)  VMEM  output rows
    R, Np = x_ref.shape
    x = x_ref[...]                                 # pooling math in input dtype
                                                   # (bf16 on v6e/v7x, f32 on v5e)

    # Per-lane pixel coordinates: W is a power of two -> two bit ops, no id table.
    lane = lax.broadcasted_iota(jnp.int32, (1, Np), 1)
    col = lane & (W - 1)
    row = lane >> log2w
    zero = jnp.array(0, x.dtype)

    # 3x3 AvgPool(stride 1, pad 1, count_include_pad=True) == always /9:
    # separable 3-tap sums via lane rotations (XLU slot) + border masks.
    left = jnp.where(col > 0, pltpu.roll(x, shift=1, axis=1), zero)
    right = jnp.where(col < W - 1, pltpu.roll(x, shift=Np - 1, axis=1), zero)
    hsum = x + left + right
    up = jnp.where(row > 0, pltpu.roll(hsum, shift=W, axis=1), zero)
    down = jnp.where(row < H - 1, pltpu.roll(hsum, shift=Np - W, axis=1), zero)
    pooled = (hsum + up + down) * jnp.array(1.0 / 9.0, x.dtype)

    edge = (x - pooled).astype(jnp.float32)        # f32 accumulation for the conv

    # 1x1 conv + folded BN: R column-broadcast FMAs on full (R, Np) tiles
    # (no one-row slivers, no concatenate).
    # TODO(synk): for real YOLO branch widths (C >= ~32-64) switch to
    #   jnp.dot(w_ref[...], edge, preferred_element_type=jnp.float32) on the MXU.
    w = w_ref[...].astype(jnp.float32)
    acc = w[:, 0:1] * edge[0:1, :]
    for ci in range(1, R):
        acc = acc + w[:, ci:ci + 1] * edge[ci:ci + 1, :]
    y = jax.nn.sigmoid(acc + b_ref[...].astype(jnp.float32))

    o_ref[...] = (x.astype(jnp.float32) + y).astype(o_ref.dtype)


def edge_refinement(x_nchw, w_fold, b_fold):
    """x_nchw: (B, C, H, W). w_fold: (C_out, C_in) BN-folded 1x1 conv weight.
    b_fold: (C_out,) BN-folded bias. Returns (B, C, H, W)."""
    B, C, H, W = x_nchw.shape
    assert W & (W - 1) == 0 and W > 0, "power-of-two W expected"
    # TODO(synk): for non-power-of-two W (e.g. 40x40/20x20 maps), pass four
    # precomputed {0,1} border masks instead of the in-kernel iota bit ops.
    N = H * W
    Np = ((N + 127) // 128) * 128                  # lane-dense (unmasked vst)
    log2w = W.bit_length() - 1

    # Sublane packing: pack G images per block so the block has 8 (f32) /
    # 16 (bf16) rows when C is small.
    sub = 16 if x_nchw.dtype == jnp.bfloat16 else 8
    if C >= sub:
        G = 1
    else:
        G = min(B, max(1, sub // C))
        while B % G != 0:                          # keep an integral grid
            G -= 1
    R = G * C
    grid = (B // G,)

    xf = x_nchw.reshape(B * C, N)                  # free reshape: contiguous, no transpose
    if Np != N:
        xf = jnp.pad(xf, ((0, 0), (0, Np - N)))    # padded lanes never leak into real
                                                   # lanes (border masks gate every roll)

    # Block-diagonal BN-folded weight / tiled bias, identical for every grid step
    # (constant index_map -> stays resident in VMEM, no re-DMA).
    w_big = jnp.kron(jnp.eye(G, dtype=w_fold.dtype), w_fold)      # (R, R)
    b_big = jnp.tile(b_fold, G).reshape(R, 1)                     # (R, 1)

    kernel = functools.partial(edge_refine_kernel, H=H, W=W, log2w=log2w)

    out = pl.pallas_call(
        kernel,
        out_shape=jax.ShapeDtypeStruct((B * C, Np), x_nchw.dtype),
        grid_spec=pltpu.PrefetchScalarGridSpec(
            num_scalar_prefetch=0,
            grid=grid,
            in_specs=[
                pl.BlockSpec((R, Np), lambda i: (i, 0)),   # packed image rows
                pl.BlockSpec((R, R), lambda i: (0, 0)),    # block-diag weights (resident)
                pl.BlockSpec((R, 1), lambda i: (0, 0)),    # bias column (resident)
            ],
            out_specs=pl.BlockSpec((R, Np), lambda i: (i, 0)),
        ),
        compiler_params=pltpu.CompilerParams(
            dimension_semantics=("parallel",),             # shards blocks across v7x TCs
            vmem_limit_bytes=32 * 1024 * 1024,             # <= ~48 MiB for v7x's 64 MiB VMEM
        ),
    )(xf, w_big, b_big)

    if Np != N:
        out = out[:, :N]
    return out.reshape(B, C, H, W)


def ref_forward(x, conv_w, gamma, beta, mean, var, eps):
    """Pure-JAX reference mirroring the PyTorch EdgeRefinement module (NCHW)."""
    B, C, H, W = x.shape
    xp = jnp.pad(x, ((0, 0), (0, 0), (1, 1), (1, 1)))
    pooled = sum(xp[:, :, dy:dy + H, dx:dx + W]
                 for dy in range(3) for dx in range(3)) / 9.0
    edge = x - pooled
    y = jnp.einsum('bchw,oc->bohw', edge, conv_w)            # 1x1 conv, no bias
    scale = gamma / jnp.sqrt(var + eps)
    y = y * scale[None, :, None, None] + (beta - mean * scale)[None, :, None, None]
    y = jax.nn.sigmoid(y)
    return x + y


if __name__ == "__main__":
    B, C, H, W = 2, 4, 16, 16
    eps = 1e-5

    key = jax.random.PRNGKey(0)
    kx, kw, kg, kb, km, kv = jax.random.split(key, 6)

    x = jax.random.normal(kx, (B, C, H, W), dtype=jnp.float32)

    # Synthetic Conv2d(1x1, bias=False) weight (squeezed to (C_out, C_in)) + BN stats.
    conv_w = jax.random.normal(kw, (C, C), dtype=jnp.float32) * 0.5
    gamma = 1.0 + 0.1 * jax.random.normal(kg, (C,), dtype=jnp.float32)
    beta = 0.1 * jax.random.normal(kb, (C,), dtype=jnp.float32)
    running_mean = 0.1 * jax.random.normal(km, (C,), dtype=jnp.float32)
    running_var = jnp.abs(1.0 + 0.1 * jax.random.normal(kv, (C,), dtype=jnp.float32))

    # Fold BN into the 1x1 conv:  y[o] = b_fold[o] + sum_c w_fold[o, c] * edge[c]
    scale = gamma / jnp.sqrt(running_var + eps)              # (C_out,)
    w_fold = conv_w * scale[:, None]                         # (C_out, C_in)
    b_fold = beta - running_mean * scale                     # (C_out,)

    out = edge_refinement(x, w_fold, b_fold)
    out = jax.block_until_ready(out)

    ref = ref_forward(x, conv_w, gamma, beta, running_mean, running_var, eps)
    np.testing.assert_allclose(np.asarray(out), np.asarray(ref), rtol=1e-5, atol=1e-5)

    print("KERNEL_OK")
</pallas_src>

<mosaic_0001>
module attributes {stable_mosaic.version = 11 : i64} {
  func.func @edge_refine_kernel(%arg0: i32, %arg1: memref<8x256xf32, #tpu.memory_space<vmem>>, %arg2: memref<8x8xf32, #tpu.memory_space<vmem>>, %arg3: memref<8x1xf32, #tpu.memory_space<vmem>>, %arg4: memref<8x256xf32, #tpu.memory_space<vmem>>) attributes {dimension_semantics = [#tpu.dimension_semantics<parallel>], iteration_bounds = array<i64: 1>, scalar_prefetch = 0 : i64, scratch_operands = 0 : i64, tpu.core_type = #tpu.core_type<tc>, window_params = [{transform_indices = @transform_0, window_bounds = array<i64: 8, 256>}, {pipeline_mode = #tpu.pipeline_mode<synchronous>, transform_indices = @transform_1, window_bounds = array<i64: 8, 8>}, {pipeline_mode = #tpu.pipeline_mode<synchronous>, transform_indices = @transform_2, window_bounds = array<i64: 8, 1>}, {transform_indices = @transform_3, window_bounds = array<i64: 8, 256>}]} {
    %c0 = arith.constant 0 : index
    %c0_0 = arith.constant 0 : index
    %0 = vector.load %arg1[%c0, %c0_0] : memref<8x256xf32, #tpu.memory_space<vmem>>, vector<8x256xf32>
    %1 = tpu.iota {dimensions = array<i32: 1>} : vector<1x256xi32>
    %c15_i32 = arith.constant 15 : i32
    %2 = vector.broadcast %c15_i32 : i32 to vector<1x256xi32>
    %3 = arith.andi %1, %2 : vector<1x256xi32>
    %c4_i32 = arith.constant 4 : i32
    %4 = vector.broadcast %c4_i32 : i32 to vector<1x256xi32>
    %5 = arith.shrsi %1, %4 : vector<1x256xi32>
    %c0_i32 = arith.constant 0 : i32
    %6 = vector.broadcast %c0_i32 : i32 to vector<1x256xi32>
    %7 = arith.cmpi sgt, %3, %6 : vector<1x256xi32>
    %c1_i32 = arith.constant 1 : i32
    %8 = tpu.dynamic_rotate %0 by %c1_i32 dim 1 : vector<8x256xf32>, i32 -> vector<8x256xf32>
    %cst = arith.constant 0.000000e+00 : f32
    %9 = vector.shape_cast %7 : vector<1x256xi1> to vector<1x256xi1>
    %10 = vector.broadcast %9 : vector<1x256xi1> to vector<8x256xi1>
    %11 = vector.broadcast %cst : f32 to vector<8x256xf32>
    %12 = arith.select %10, %8, %11 : vector<8x256xi1>, vector<8x256xf32>
    %c15_i32_1 = arith.constant 15 : i32
    %13 = vector.broadcast %c15_i32_1 : i32 to vector<1x256xi32>
    %14 = arith.cmpi slt, %3, %13 : vector<1x256xi32>
    %c255_i32 = arith.constant 255 : i32
    %15 = tpu.dynamic_rotate %0 by %c255_i32 dim 1 : vector<8x256xf32>, i32 -> vector<8x256xf32>
    %cst_2 = arith.constant 0.000000e+00 : f32
    %16 = vector.shape_cast %14 : vector<1x256xi1> to vector<1x256xi1>
    %17 = vector.broadcast %16 : vector<1x256xi1> to vector<8x256xi1>
    %18 = vector.broadcast %cst_2 : f32 to vector<8x256xf32>
    %19 = arith.select %17, %15, %18 : vector<8x256xi1>, vector<8x256xf32>
    %20 = arith.addf %0, %12 : vector<8x256xf32>
    %21 = arith.addf %20, %19 : vector<8x256xf32>
    %c0_i32_3 = arith.constant 0 : i32
    %22 = vector.broadcast %c0_i32_3 : i32 to vector<1x256xi32>
    %23 = arith.cmpi sgt, %5, %22 : vector<1x256xi32>
    %c16_i32 = arith.constant 16 : i32
    %24 = tpu.dynamic_rotate %21 by %c16_i32 dim 1 : vector<8x256xf32>, i32 -> vector<8x256xf32>
    %cst_4 = arith.constant 0.000000e+00 : f32
    %25 = vector.shape_cast %23 : vector<1x256xi1> to vector<1x256xi1>
    %26 = vector.broadcast %25 : vector<1x256xi1> to vector<8x256xi1>
    %27 = vector.broadcast %cst_4 : f32 to vector<8x256xf32>
    %28 = arith.select %26, %24, %27 : vector<8x256xi1>, vector<8x256xf32>
    %c15_i32_5 = arith.constant 15 : i32
    %29 = vector.broadcast %c15_i32_5 : i32 to vector<1x256xi32>
    %30 = arith.cmpi slt, %5, %29 : vector<1x256xi32>
    %c240_i32 = arith.constant 240 : i32
    %31 = tpu.dynamic_rotate %21 by %c240_i32 dim 1 : vector<8x256xf32>, i32 -> vector<8x256xf32>
    %cst_6 = arith.constant 0.000000e+00 : f32
    %32 = vector.shape_cast %30 : vector<1x256xi1> to vector<1x256xi1>
    %33 = vector.broadcast %32 : vector<1x256xi1> to vector<8x256xi1>
    %34 = vector.broadcast %cst_6 : f32 to vector<8x256xf32>
    %35 = arith.select %33, %31, %34 : vector<8x256xi1>, vector<8x256xf32>
    %36 = arith.addf %21, %28 : vector<8x256xf32>
    %37 = arith.addf %36, %35 : vector<8x256xf32>
    %cst_7 = arith.constant 0.111111112 : f32
    %38 = vector.broadcast %cst_7 : f32 to vector<8x256xf32>
    %39 = arith.mulf %37, %38 : vector<8x256xf32>
    %40 = arith.subf %0, %39 : vector<8x256xf32>
    %c0_8 = arith.constant 0 : index
    %c0_9 = arith.constant 0 : index
    %41 = vector.load %arg2[%c0_8, %c0_9] : memref<8x8xf32, #tpu.memory_space<vmem>>, vector<8x8xf32>
    %42 = vector.extract_strided_slice %41 {offsets = [0, 0], sizes = [8, 1], strides = [1, 1]} : vector<8x8xf32> to vector<8x1xf32>
    %43 = vector.extract_strided_slice %40 {offsets = [0, 0], sizes = [1, 256], strides = [1, 1]} : vector<8x256xf32> to vector<1x256xf32>
    %44 = vector.broadcast %42 : vector<8x1xf32> to vector<8x256xf32>
    %45 = vector.broadcast %43 : vector<1x256xf32> to vector<8x256xf32>
    %46 = arith.mulf %44, %45 : vector<8x256xf32>
    %47 = vector.extract_strided_slice %41 {offsets = [0, 1], sizes = [8, 1], strides = [1, 1]} : vector<8x8xf32> to vector<8x1xf32>
    %48 = vector.extract_strided_slice %40 {offsets = [1, 0], sizes = [1, 256], strides = [1, 1]} : vector<8x256xf32> to vector<1x256xf32>
    %49 = vector.broadcast %47 : vector<8x1xf32> to vector<8x256xf32>
    %50 = vector.broadcast %48 : vector<1x256xf32> to vector<8x256xf32>
    %51 = arith.mulf %49, %50 : vector<8x256xf32>
    %52 = arith.addf %46, %51 : vector<8x256xf32>
    %53 = vector.extract_strided_slice %41 {offsets = [0, 2], sizes = [8, 1], strides = [1, 1]} : vector<8x8xf32> to vector<8x1xf32>
    %54 = vector.extract_strided_slice %40 {offsets = [2, 0], sizes = [1, 256], strides = [1, 1]} : vector<8x256xf32> to vector<1x256xf32>
    %55 = vector.broadcast %53 : vector<8x1xf32> to vector<8x256xf32>
    %56 = vector.broadcast %54 : vector<1x256xf32> to vector<8x256xf32>
    %57 = arith.mulf %55, %56 : vector<8x256xf32>
    %58 = arith.addf %52, %57 : vector<8x256xf32>
    %59 = vector.extract_strided_slice %41 {offsets = [0, 3], sizes = [8, 1], strides = [1, 1]} : vector<8x8xf32> to vector<8x1xf32>
    %60 = vector.extract_strided_slice %40 {offsets = [3, 0], sizes = [1, 256], strides = [1, 1]} : vector<8x256xf32> to vector<1x256xf32>
    %61 = vector.broadcast %59 : vector<8x1xf32> to vector<8x256xf32>
    %62 = vector.broadcast %60 : vector<1x256xf32> to vector<8x256xf32>
    %63 = arith.mulf %61, %62 : vector<8x256xf32>
    %64 = arith.addf %58, %63 : vector<8x256xf32>
    %65 = vector.extract_strided_slice %41 {offsets = [0, 4], sizes = [8, 1], strides = [1, 1]} : vector<8x8xf32> to vector<8x1xf32>
    %66 = vector.extract_strided_slice %40 {offsets = [4, 0], sizes = [1, 256], strides = [1, 1]} : vector<8x256xf32> to vector<1x256xf32>
    %67 = vector.broadcast %65 : vector<8x1xf32> to vector<8x256xf32>
    %68 = vector.broadcast %66 : vector<1x256xf32> to vector<8x256xf32>
    %69 = arith.mulf %67, %68 : vector<8x256xf32>
    %70 = arith.addf %64, %69 : vector<8x256xf32>
    %71 = vector.extract_strided_slice %41 {offsets = [0, 5], sizes = [8, 1], strides = [1, 1]} : vector<8x8xf32> to vector<8x1xf32>
    %72 = vector.extract_strided_slice %40 {offsets = [5, 0], sizes = [1, 256], strides = [1, 1]} : vector<8x256xf32> to vector<1x256xf32>
    %73 = vector.broadcast %71 : vector<8x1xf32> to vector<8x256xf32>
    %74 = vector.broadcast %72 : vector<1x256xf32> to vector<8x256xf32>
    %75 = arith.mulf %73, %74 : vector<8x256xf32>
    %76 = arith.addf %70, %75 : vector<8x256xf32>
    %77 = vector.extract_strided_slice %41 {offsets = [0, 6], sizes = [8, 1], strides = [1, 1]} : vector<8x8xf32> to vector<8x1xf32>
    %78 = vector.extract_strided_slice %40 {offsets = [6, 0], sizes = [1, 256], strides = [1, 1]} : vector<8x256xf32> to vector<1x256xf32>
    %79 = vector.broadcast %77 : vector<8x1xf32> to vector<8x256xf32>
    %80 = vector.broadcast %78 : vector<1x256xf32> to vector<8x256xf32>
    %81 = arith.mulf %79, %80 : vector<8x256xf32>
    %82 = arith.addf %76, %81 : vector<8x256xf32>
    %83 = vector.extract_strided_slice %41 {offsets = [0, 7], sizes = [8, 1], strides = [1, 1]} : vector<8x8xf32> to vector<8x1xf32>
    %84 = vector.extract_strided_slice %40 {offsets = [7, 0], sizes = [1, 256], strides = [1, 1]} : vector<8x256xf32> to vector<1x256xf32>
    %85 = vector.broadcast %83 : vector<8x1xf32> to vector<8x256xf32>
    %86 = vector.broadcast %84 : vector<1x256xf32> to vector<8x256xf32>
    %87 = arith.mulf %85, %86 : vector<8x256xf32>
    %88 = arith.addf %82, %87 : vector<8x256xf32>
    %c0_10 = arith.constant 0 : index
    %c0_11 = arith.constant 0 : index
    %89 = vector.load %arg3[%c0_10, %c0_11] : memref<8x1xf32, #tpu.memory_space<vmem>>, vector<8x1xf32>
    %90 = vector.broadcast %89 : vector<8x1xf32> to vector<8x256xf32>
    %91 = arith.addf %88, %90 : vector<8x256xf32>
    %92 = arith.negf %91 : vector<8x256xf32>
    %93 = math.exp %92 : vector<8x256xf32>
    %cst_12 = arith.constant 1.000000e+00 : f32
    %94 = vector.broadcast %cst_12 : f32 to vector<8x256xf32>
    %95 = arith.addf %94, %93 : vector<8x256xf32>
    %96 = arith.divf %94, %95 : vector<8x256xf32>
    %97 = arith.addf %0, %96 : vector<8x256xf32>
    %c0_13 = arith.constant 0 : index
    %c0_14 = arith.constant 0 : index
    %98 = vector.load %arg4[%c0_13, %c0_14] : memref<8x256xf32, #tpu.memory_space<vmem>>, vector<8x256xf32>
    tpu.vector_store %arg4[%c0_13, %c0_14], %97 {strides = array<i32>} : memref<8x256xf32, #tpu.memory_space<vmem>>, vector<8x256xf32>,
    return
  }
  func.func @transform_0(%arg0: i32) -> (i32, i32) {
    %c0_i32 = arith.constant 0 : i32
    %c0_i32_0 = arith.constant 0 : i32
    return %arg0, %c0_i32 : i32, i32
  }
  func.func @transform_1(%arg0: i32) -> (i32, i32) {
    %c0_i32 = arith.constant 0 : i32
    %c0_i32_0 = arith.constant 0 : i32
    %c0_i32_1 = arith.constant 0 : i32
    return %c0_i32, %c0_i32_0 : i32, i32
  }
  func.func @transform_2(%arg0: i32) -> (i32, i32) {
    %c0_i32 = arith.constant 0 : i32
    %c0_i32_0 = arith.constant 0 : i32
    %c0_i32_1 = arith.constant 0 : i32
    return %c0_i32, %c0_i32_0 : i32, i32
  }
  func.func @transform_3(%arg0: i32) -> (i32, i32) {
    %c0_i32 = arith.constant 0 : i32
    %c0_i32_0 = arith.constant 0 : i32
    return %arg0, %c0_i32 : i32, i32
  }
}

</mosaic_0001>

<llo_original>
// kernel: tpu_custom_call.1
$region0: #{tpu_custom_call.1}
  #allocation0 [shape = 'u32[]', space=smem, size = 0x4, offset = 0x4, fixed_abs, tag = 'smem constant byte address 0x4 - core index']
  #allocation1 [shape = 'u32[144,128]{1,0:T(1,128)}', space=vmem, size = 0x12000, scoped, tag = 'internal scratch']
  %s0 = inlined_call_operand.hbm [shape: f32[8,256], index: 0, kind: input, shape index: {}]
  %s1 = inlined_call_operand.vmem [shape: f32[8,8], index: 1, kind: input, shape index: {}]
  %s2 = inlined_call_operand.vmem [shape: f32[8,1], index: 2, kind: input, shape index: {}]
  %s3 = inlined_call_operand.hbm [shape: f32[8,256], index: 3, kind: output, shape index: {}]
  %s4 = sld [smem:[#allocation0]]
  $region26: #{tpu_custom_call.1} parent=0
    _
  %s6 = ssub.s32 1, %s4
  %s7 = scalar_select 0, %s6, %s4
  $region1: #{tpu_custom_call.1} parent=0
    #allocation2 [shape = 'u8[8192]{0}', space=vmem, size = 0x2000, scoped, tag = 'input window, operand 0, single buffered']
    #allocation3 [shape = 's32[1]{0}', space=sflag, size = 0x4, scoped, tag = 'scoped memory for tpu_custom_call.1']
    #allocation4 [shape = 's32[1]{0}', space=sflag, size = 0x4, scoped, tag = 'scoped memory for tpu_custom_call.1']
    #allocation5 [shape = 'u8[8192]{0}', space=vmem, size = 0x2000, scoped, tag = 'output window, operand 0, single buffered']
    %8 = vsyncpa [#allocation3], 0
    %9 = vsyncpa [#allocation4], 0
    // Predicated region
    $region2: #{tpu_custom_call.1} parent=1 // pred_check
      _
    $region3: #{tpu_custom_call.1} parent=1 // pred_check_branch
      %11 = sbr.rel (0) target = $region5
    $region4: #{tpu_custom_call.1} parent=1 // pred_region
      %s13 = ssub.s32 256, 256
      %14 = vsyncadd [#allocation3], %s13
      %s16 = sshll.u32 [#allocation2], 4
      %s17 = int_to_ptr.vmem [resolvable:$true] %s16
      %19 = dma.hbm_to_vmem [thread:$0]  %s0, 256, %s17, [#allocation3]
    $region5: #{tpu_custom_call.1} parent=1 // pred_fallthru
      _
    // Predicated region
    $region6: #{tpu_custom_call.1} parent=1 // pred_check
      _
    $region7: #{tpu_custom_call.1} parent=1 // pred_check_branch
      %21 = sbr.rel (0) target = $region9
    $region8: #{tpu_custom_call.1} parent=1 // pred_region
      _
    $region9: #{tpu_custom_call.1} parent=1 // pred_fallthru
      _
    // Predicated region
    $region10: #{tpu_custom_call.1} parent=1 // pred_check
      _
    $region11: #{tpu_custom_call.1} parent=1 // pred_check_branch
      %23 = sbr.rel (0) target = $region13
    $region12: #{tpu_custom_call.1} parent=1 // pred_region
      _
    $region13: #{tpu_custom_call.1} parent=1 // pred_fallthru
      _
    // Predicated region
    $region14: #{tpu_custom_call.1} parent=1 // pred_check
      _
    $region15: #{tpu_custom_call.1} parent=1 // pred_check_branch
      %25 = sbr.rel (0) target = $region17
    $region16: #{tpu_custom_call.1} parent=1 // pred_region
      %26 = dma.done [#allocation3], 256
    $region17: #{tpu_custom_call.1} parent=1 // pred_fallthru
      _
    %v27 = vld [vmem:[#allocation2] sm:$0xff]
    %v28 = vld [vmem:[#allocation2 + $0x8] sm:$0xff]
    %v29 = vlaneseq
    %v30 = vand.u32 %v29, 127
    %v31 = vadd.s32 %v30, 128
    %v32 = vand.u32 %v30, 15
    %v33 = vand.u32 %v31, 15
    %v34 = vshra.s32 %v30, 4
    %v35 = vshra.s32 %v31, 4
    %vm36 = vcmp.gt.s32.totalorder %v32, 0
    %vm37 = vcmp.gt.s32.totalorder %v33, 0
    %38 = vrot.lane.b32.xlu0 %v27, 1
    %v39 = vpop.permute.xlu0 %38
    %40 = vrot.lane.b32.xlu0 %v28, 1
    %v41 = vpop.permute.xlu0 %40
    %vm42 = vcmp.lt.s32.totalorder %v30, 1
    %v43 = vsel %vm42, %v39, %v41
    %v44 = vsel %vm42, %v41, %v39
    %v45 = vsel %vm36, 1, 0
    %v46 = vsel %vm37, 1, 0
    %vm47 = vcmp.eq.s32.totalorder %v45, 1
    %vm48 = vcmp.eq.s32.totalorder %v46, 1
    %v49 = vsel %vm47, %v44, 0.0
    %v50 = vsel %vm48, %v43, 0.0
    %vm51 = vcmp.lt.s32.totalorder %v32, 15
    %vm52 = vcmp.lt.s32.totalorder %v33, 15
    %53 = vrot.lane.b32.xlu0 %v27, 127
    %v54 = vpop.permute.xlu0 %53
    %55 = vrot.lane.b32.xlu0 %v28, 127
    %v56 = vpop.permute.xlu0 %55
    %vm57 = vcmp.lt.s32.totalorder %v30, 127
    %v58 = vsel %vm57, %v54, %v56
    %v59 = vsel %vm57, %v56, %v54
    %v60 = vsel %vm51, 1, 0
    %v61 = vsel %vm52, 1, 0
    %vm62 = vcmp.eq.s32.totalorder %v60, 1
    %vm63 = vcmp.eq.s32.totalorder %v61, 1
    %v64 = vsel %vm62, %v58, 0.0
    %v65 = vsel %vm63, %v59, 0.0
    %v66 = vadd.f32 %v27, %v49
    %v67 = vadd.f32 %v28, %v50
    %v68 = vadd.f32 %v66, %v64
    %v69 = vadd.f32 %v67, %v65
    %vm70 = vcmp.gt.s32.totalorder %v34, 0
    %vm71 = vcmp.gt.s32.totalorder %v35, 0
    %72 = vrot.lane.b32.xlu0 %v68, 16
    %v73 = vpop.permute.xlu0 %72
    %74 = vrot.lane.b32.xlu0 %v69, 16
    %v75 = vpop.permute.xlu0 %74
    %vm76 = vcmp.lt.s32.totalorder %v30, 16
    %v77 = vsel %vm76, %v73, %v75
    %v78 = vsel %vm76, %v75, %v73
    %v79 = vsel %vm70, 1, 0
    %v80 = vsel %vm71, 1, 0
    %vm81 = vcmp.eq.s32.totalorder %v79, 1
    %vm82 = vcmp.eq.s32.totalorder %v80, 1
    %v83 = vsel %vm81, %v78, 0.0
    %v84 = vsel %vm82, %v77, 0.0
    %vm85 = vcmp.lt.s32.totalorder %v34, 15
    %vm86 = vcmp.lt.s32.totalorder %v35, 15
    %87 = vrot.lane.b32.xlu0 %v68, 112
    %v88 = vpop.permute.xlu0 %87
    %89 = vrot.lane.b32.xlu0 %v69, 112
    %v90 = vpop.permute.xlu0 %89
    %vm91 = vcmp.lt.s32.totalorder %v30, 112
    %v92 = vsel %vm91, %v88, %v90
    %v93 = vsel %vm91, %v90, %v88
    %v94 = vsel %vm85, 1, 0
    %v95 = vsel %vm86, 1, 0
    %vm96 = vcmp.eq.s32.totalorder %v94, 1
    %vm97 = vcmp.eq.s32.totalorder %v95, 1
    %v98 = vsel %vm96, %v92, 0.0
    %v99 = vsel %vm97, %v93, 0.0
    %v100 = vadd.f32 %v68, %v83
    %v101 = vadd.f32 %v69, %v84
    %v102 = vadd.f32 %v100, %v98
    %v103 = vadd.f32 %v101, %v99
    %v104 = vmul.f32 %v102, 0.11111111
    %v105 = vmul.f32 %v103, 0.11111111
    %v106 = vsub.f32 %v27, %v104
    %v107 = vsub.f32 %v28, %v105
    %v108 = vld [vmem:[%s1] sm:$0xff]
    %110 = vset.pattern.permute.xlu0 0
    %111 = vperm.xlu0 %110, %v108
    %v112 = vpop.permute.xlu0 %111
    %v114 = vlaneseq
    %v115 = vshrl.u32 %v114, 7
    %v116 = vsub.s32 0, %v115
    %v117 = vrot.slane %v106, %v116
    %v118 = vlaneseq
    %v119 = vshrl.u32 %v118, 7
    %v120 = vsub.s32 0, %v119
    %v121 = vrot.slane %v107, %v120
    %v122 = vmul.f32 %v112, %v117
    %v123 = vmul.f32 %v112, %v121
    %124 = vset.pattern.permute.xlu0 1
    %125 = vperm.xlu0 %124, %v108
    %v126 = vpop.permute.xlu0 %125
    %v128 = vlaneseq
    %v129 = vshrl.u32 %v128, 7
    %v130 = vsub.s32 1, %v129
    %v131 = vrot.slane %v106, %v130
    %v132 = vlaneseq
    %v133 = vshrl.u32 %v132, 7
    %v134 = vsub.s32 1, %v133
    %v135 = vrot.slane %v107, %v134
    %v136 = vmul.f32 %v126, %v131
    %v137 = vmul.f32 %v126, %v135
    %v138 = vadd.f32 %v122, %v136
    %v139 = vadd.f32 %v123, %v137
    %140 = vset.pattern.permute.xlu0 2
    %141 = vperm.xlu0 %140, %v108
    %v142 = vpop.permute.xlu0 %141
    %v144 = vlaneseq
    %v145 = vshrl.u32 %v144, 7
    %v146 = vsub.s32 2, %v145
    %v147 = vrot.slane %v106, %v146
    %v148 = vlaneseq
    %v149 = vshrl.u32 %v148, 7
    %v150 = vsub.s32 2, %v149
    %v151 = vrot.slane %v107, %v150
    %v152 = vmul.f32 %v142, %v147
    %v153 = vmul.f32 %v142, %v151
    %v154 = vadd.f32 %v138, %v152
    %v155 = vadd.f32 %v139, %v153
    %156 = vset.pattern.permute.xlu0 3
    %157 = vperm.xlu0 %156, %v108
    %v158 = vpop.permute.xlu0 %157
    %v160 = vlaneseq
    %v161 = vshrl.u32 %v160, 7
    %v162 = vsub.s32 3, %v161
    %v163 = vrot.slane %v106, %v162
    %v164 = vlaneseq
    %v165 = vshrl.u32 %v164, 7
    %v166 = vsub.s32 3, %v165
    %v167 = vrot.slane %v107, %v166
    %v168 = vmul.f32 %v158, %v163
    %v169 = vmul.f32 %v158, %v167
    %v170 = vadd.f32 %v154, %v168
    %v171 = vadd.f32 %v155, %v169
    %172 = vset.pattern.permute.xlu0 4
    %173 = vperm.xlu0 %172, %v108
    %v174 = vpop.permute.xlu0 %173
    %v176 = vlaneseq
    %v177 = vshrl.u32 %v176, 7
    %v178 = vsub.s32 4, %v177
    %v179 = vrot.slane %v106, %v178
    %v180 = vlaneseq
    %v181 = vshrl.u32 %v180, 7
    %v182 = vsub.s32 4, %v181
    %v183 = vrot.slane %v107, %v182
    %v184 = vmul.f32 %v174, %v179
    %v185 = vmul.f32 %v174, %v183
    %v186 = vadd.f32 %v170, %v184
    %v187 = vadd.f32 %v171, %v185
    %188 = vset.pattern.permute.xlu0 5
    %189 = vperm.xlu0 %188, %v108
    %v190 = vpop.permute.xlu0 %189
    %v192 = vlaneseq
    %v193 = vshrl.u32 %v192, 7
    %v194 = vsub.s32 5, %v193
    %v195 = vrot.slane %v106, %v194
    %v196 = vlaneseq
    %v197 = vshrl.u32 %v196, 7
    %v198 = vsub.s32 5, %v197
    %v199 = vrot.slane %v107, %v198
    %v200 = vmul.f32 %v190, %v195
    %v201 = vmul.f32 %v190, %v199
    %v202 = vadd.f32 %v186, %v200
    %v203 = vadd.f32 %v187, %v201
    %204 = vset.pattern.permute.xlu0 6
    %205 = vperm.xlu0 %204, %v108
    %v206 = vpop.permute.xlu0 %205
    %v208 = vlaneseq
    %v209 = vshrl.u32 %v208, 7
    %v210 = vsub.s32 6, %v209
    %v211 = vrot.slane %v106, %v210
    %v212 = vlaneseq
    %v213 = vshrl.u32 %v212, 7
    %v214 = vsub.s32 6, %v213
    %v215 = vrot.slane %v107, %v214
    %v216 = vmul.f32 %v206, %v211
    %v217 = vmul.f32 %v206, %v215
    %v218 = vadd.f32 %v202, %v216
    %v219 = vadd.f32 %v203, %v217
    %220 = vset.pattern.permute.xlu0 7
    %221 = vperm.xlu0 %220, %v108
    %v222 = vpop.permute.xlu0 %221
    %v224 = vlaneseq
    %v225 = vshrl.u32 %v224, 7
    %v226 = vsub.s32 7, %v225
    %v227 = vrot.slane %v106, %v226
    %v228 = vlaneseq
    %v229 = vshrl.u32 %v228, 7
    %v230 = vsub.s32 7, %v229
    %v231 = vrot.slane %v107, %v230
    %v232 = vmul.f32 %v222, %v227
    %v233 = vmul.f32 %v222, %v231
    %v234 = vadd.f32 %v218, %v232
    %v235 = vadd.f32 %v219, %v233
    %v236 = vld [vmem:[%s2] sm:$0xff]
    %238 = vset.pattern.permute.xlu0 0
    %239 = vperm.xlu0 %238, %v236
    %v240 = vpop.permute.xlu0 %239
    %v242 = vadd.f32 %v234, %v240
    %v243 = vadd.f32 %v235, %v240
    %v244 = vxor.u32 %v242, 2147483648
    %v245 = vxor.u32 %v243, 2147483648
    %v246 = vmul.f32 %v244, 1.442695
    %v247 = vpow.pop %v246
    %v248 = vmul.f32 %v245, 1.442695
    %v249 = vpow.pop %v248
    %v250 = vadd.f32 %v247, 1.0
    %v251 = vadd.f32 %v249, 1.0
    %v252 = vrcp.pop %v250
    %v253 = vmul.f32 1.0, %v252
    %v254 = vrcp.pop %v251
    %v255 = vmul.f32 1.0, %v254
    %v256 = vadd.f32 %v27, %v253
    %v257 = vadd.f32 %v28, %v255
    %258 = vst [vmem:[#allocation5] sm:$0xff] %v256
    %259 = vst [vmem:[#allocation5 + $0x8] sm:$0xff] %v257
    // Predicated region
    $region18: #{tpu_custom_call.1} parent=1 // pred_check
      _
    $region19: #{tpu_custom_call.1} parent=1 // pred_check_branch
      %261 = sbr.rel (0) target = $region21
    $region20: #{tpu_custom_call.1} parent=1 // pred_region
      %s263 = ssub.s32 256, 256
      %264 = vsyncadd [#allocation4], %s263
      %s266 = sshll.u32 [#allocation5], 4
      %s267 = int_to_ptr.vmem [resolvable:$true] %s266
      %269 = dma.vmem_to_hbm [thread:$0]  %s267, 256, %s3, [#allocation4]
    $region21: #{tpu_custom_call.1} parent=1 // pred_fallthru
      _
    // Predicated region
    $region22: #{tpu_custom_call.1} parent=1 // pred_check
      _
    $region23: #{tpu_custom_call.1} parent=1 // pred_check_branch
      %271 = sbr.rel (0) target = $region25
    $region24: #{tpu_custom_call.1} parent=1 // pred_region
      %272 = dma.done [#allocation4], 256
    $region25: #{tpu_custom_call.1} parent=1 // pred_fallthru
      _
    %273 = vsyncpa [#allocation3], 1
    %274 = vsyncpa [#allocation4], 1

</llo_original>
